<compile_context>
chip_gen: v6e
topology: v6e:2x2x1
jax: 0.10.0
libtpu: 0.0.40
codegen_flags: <defaults>
</compile_context>

<pallas_src>
import functools
import math

import jax
import jax.numpy as jnp
from jax.experimental import pallas as pl
from jax.experimental.pallas import tpu as pltpu


# ---------------------------------------------------------------------------
# helpers
# ---------------------------------------------------------------------------
def _round_up(x, n):
    return ((x + n - 1) // n) * n


def _pick_tile_m(m, row_bytes, resident_bytes, target=512,
                 vmem_budget=40 * 1024 * 1024):
    """Largest row tile (multiple of 8, <= target) whose double-buffered
    footprint plus resident weights fits the VMEM budget (v7x-safe)."""
    avail = max(vmem_budget - resident_bytes, row_bytes * 8)
    tile = min(target, avail // max(row_bytes, 1))
    tile = min(tile, _round_up(m, 8))
    tile = max(8, (tile // 8) * 8)
    return int(tile)


def _vmem_limit_bytes(footprint):
    return int(min(64 * 1024 * 1024, max(32 * 1024 * 1024, 2 * footprint)))


# ---------------------------------------------------------------------------
# kernels
# ---------------------------------------------------------------------------
def _linear_kernel(x_ref, w_ref, b_ref, o_ref):
    # x: (tile_m, in_dim) bf16 ; w: (in_dim, out_dim) bf16 ; b: (1, out_dim) f32
    y = jnp.dot(x_ref[...], w_ref[...], preferred_element_type=jnp.float32)
    o_ref[...] = (y + b_ref[...]).astype(o_ref.dtype)


def _fan_kernel(p_dim, x_ref, w_ref, bplus_ref, bminus_ref, bg_ref, amp_ref, o_ref):
    # x: (tile_m, in_dim) bf16 ; w = [Wp | Wg]: (in_dim, p_dim+g_dim) bf16
    x = x_ref[...]
    pg = jnp.dot(x, w_ref[...], preferred_element_type=jnp.float32)

    p = pg[:, :p_dim]                       # (tile_m, p_dim), no bias yet (folded)
    g_pre = pg[:, p_dim:] + bg_ref[...]     # (tile_m, g_dim)

    # exact (erf) GELU, matching torch.nn.GELU() default
    # (tanh approx would route to EUP; kept exact for parity with the spec)
    inv_sqrt2 = jnp.float32(1.0 / math.sqrt(2.0))
    g = 0.5 * g_pre * (1.0 + jax.lax.erf(g_pre * inv_sqrt2))

    amp = amp_ref[...]                      # (1, p_dim)
    sin_part = amp * jnp.sin(p + bplus_ref[...])    # bp + offset folded
    cos_part = amp * jnp.cos(p + bminus_ref[...])   # bp + pi/2 - offset folded

    # single lane-dense store of the concatenated tile
    out = jnp.concatenate([sin_part, cos_part, g], axis=-1)
    o_ref[...] = out.astype(o_ref.dtype)


# ---------------------------------------------------------------------------
# wrappers
# ---------------------------------------------------------------------------
def linear_pallas(src, w, b, *, matmul_dtype=jnp.bfloat16, tile_m_target=512):
    """y = src @ w + b   (w: [in_dim, out_dim], b: [out_dim])"""
    in_dim = src.shape[-1]
    out_dim = w.shape[1]
    lead = src.shape[:-1]
    m = math.prod(lead) if lead else 1
    itemsize = jnp.dtype(matmul_dtype).itemsize

    x2d = src.reshape(m, in_dim).astype(matmul_dtype)
    w_c = w.astype(matmul_dtype)
    b2 = b.reshape(1, out_dim).astype(jnp.float32)

    resident = in_dim * out_dim * itemsize + out_dim * 4
    row_bytes = 2 * (in_dim * itemsize + out_dim * 4)   # double-buffered x + out
    tile_m = _pick_tile_m(m, row_bytes, resident, target=tile_m_target)
    m_pad = _round_up(m, tile_m)
    if m_pad != m:
        x2d = jnp.pad(x2d, ((0, m_pad - m), (0, 0)))
    grid = (m_pad // tile_m,)

    footprint = tile_m * row_bytes + 2 * resident
    bytes_accessed = (m_pad * in_dim * itemsize + in_dim * out_dim * itemsize
                      + out_dim * 4 + m_pad * out_dim * 4)

    out2d = pl.pallas_call(
        _linear_kernel,
        out_shape=jax.ShapeDtypeStruct((m_pad, out_dim), jnp.float32),
        grid=grid,
        in_specs=[
            pl.BlockSpec((tile_m, in_dim), lambda i: (i, 0)),
            pl.BlockSpec((in_dim, out_dim), lambda i: (0, 0)),   # resident weight
            pl.BlockSpec((1, out_dim), lambda i: (0, 0)),        # resident bias
        ],
        out_specs=pl.BlockSpec((tile_m, out_dim), lambda i: (i, 0)),
        compiler_params=pltpu.CompilerParams(
            dimension_semantics=("parallel",),
            vmem_limit_bytes=_vmem_limit_bytes(footprint),
        ),
        cost_estimate=pl.CostEstimate(
            flops=2 * m_pad * in_dim * out_dim,
            transcendentals=0,
            bytes_accessed=bytes_accessed,
        ),
    )(x2d, w_c, b2)

    return out2d[:m].reshape(*lead, out_dim)


def fan_layer_amplitude_phase(src, wp, bp, wg, bg, offset, amplitude, *,
                              matmul_dtype=jnp.bfloat16, tile_m_target=512):
    """Pallas forward of FANLayerAmplitudePhase (fused p/g matmul)."""
    in_dim = src.shape[-1]
    p_dim = wp.shape[1]
    g_dim = wg.shape[1]
    fused_n = p_dim + g_dim
    out_dim = 2 * p_dim + g_dim
    lead = src.shape[:-1]
    m = math.prod(lead) if lead else 1
    itemsize = jnp.dtype(matmul_dtype).itemsize

    x2d = src.reshape(m, in_dim).astype(matmul_dtype)
    # one wide MXU dot: [Wp | Wg]
    w_fused = jnp.concatenate([wp, wg], axis=1).astype(matmul_dtype)
    # fold constants: sin(p + bp + offset), cos(p + bp + pi/2 - offset)
    bplus = (bp + offset).reshape(1, p_dim).astype(jnp.float32)
    bminus = (bp + jnp.float32(math.pi / 2) - offset).reshape(1, p_dim).astype(jnp.float32)
    bg2 = bg.reshape(1, g_dim).astype(jnp.float32)
    amp2 = amplitude.reshape(1, p_dim).astype(jnp.float32)

    resident = in_dim * fused_n * itemsize + (3 * p_dim + g_dim) * 4
    row_bytes = 2 * (in_dim * itemsize + out_dim * 4)   # double-buffered x + out
    tile_m = _pick_tile_m(m, row_bytes, resident, target=tile_m_target)
    m_pad = _round_up(m, tile_m)
    if m_pad != m:
        x2d = jnp.pad(x2d, ((0, m_pad - m), (0, 0)))
    grid = (m_pad // tile_m,)

    footprint = tile_m * row_bytes + 2 * resident
    bytes_accessed = (m_pad * in_dim * itemsize + in_dim * fused_n * itemsize
                      + (3 * p_dim + g_dim) * 4 + m_pad * out_dim * 4)

    out2d = pl.pallas_call(
        functools.partial(_fan_kernel, p_dim),
        out_shape=jax.ShapeDtypeStruct((m_pad, out_dim), jnp.float32),
        grid=grid,
        in_specs=[
            pl.BlockSpec((tile_m, in_dim), lambda i: (i, 0)),
            pl.BlockSpec((in_dim, fused_n), lambda i: (0, 0)),   # resident fused W
            pl.BlockSpec((1, p_dim), lambda i: (0, 0)),          # bp + offset
            pl.BlockSpec((1, p_dim), lambda i: (0, 0)),          # bp + pi/2 - offset
            pl.BlockSpec((1, g_dim), lambda i: (0, 0)),          # bg
            pl.BlockSpec((1, p_dim), lambda i: (0, 0)),          # amplitude
        ],
        out_specs=pl.BlockSpec((tile_m, out_dim), lambda i: (i, 0)),
        compiler_params=pltpu.CompilerParams(
            dimension_semantics=("parallel",),
            vmem_limit_bytes=_vmem_limit_bytes(footprint),
        ),
        cost_estimate=pl.CostEstimate(
            flops=2 * m_pad * in_dim * fused_n,
            transcendentals=m_pad * (2 * p_dim + g_dim),   # sin, cos, erf
            bytes_accessed=bytes_accessed,
        ),
    )(x2d, w_fused, bplus, bminus, bg2, amp2)

    return out2d[:m].reshape(*lead, out_dim)


def fan_amplitude_phase_model_forward(src, params, *, matmul_dtype=jnp.bfloat16):
    """Full FANAmplitudePhaseModel forward: embed -> FAN layers -> output linear."""
    x = linear_pallas(src, params["emb_w"], params["emb_b"], matmul_dtype=matmul_dtype)
    for layer in params["fan_layers"]:
        x = fan_layer_amplitude_phase(x, *layer, matmul_dtype=matmul_dtype)
    x = linear_pallas(x, params["out_w"], params["out_b"], matmul_dtype=matmul_dtype)
    # last layer already maps to output_dim, so torch's reshape branch is a no-op
    return x


# ---------------------------------------------------------------------------
# deterministic parameter init (uniform, roughly torch Linear default scale)
# ---------------------------------------------------------------------------
def _init_linear(key, in_dim, out_dim):
    k_w, k_b = jax.random.split(key)
    bound = 1.0 / math.sqrt(in_dim)
    w = jax.random.uniform(k_w, (in_dim, out_dim), jnp.float32, -bound, bound)
    b = jax.random.uniform(k_b, (out_dim,), jnp.float32, -bound, bound)
    return w, b


def _init_fan_layer(key, input_dim, output_dim):
    if output_dim % 2 != 0:
        raise ValueError("Output dimension must be even.")
    p_dim = output_dim // 4
    g_dim = output_dim // 2
    k_p, k_g = jax.random.split(key)
    wp, bp = _init_linear(k_p, input_dim, p_dim)
    wg, bg = _init_linear(k_g, input_dim, g_dim)
    offset = jnp.full((p_dim,), math.pi / 4, dtype=jnp.float32)
    amplitude = jnp.ones((p_dim,), dtype=jnp.float32)
    return wp, bp, wg, bg, offset, amplitude


def init_model_params(key, input_dim, output_dim, hidden_dim, num_layers):
    keys = jax.random.split(key, num_layers + 1)
    emb_w, emb_b = _init_linear(keys[0], input_dim, hidden_dim)
    fan_layers = tuple(_init_fan_layer(keys[i + 1], hidden_dim, hidden_dim)
                       for i in range(num_layers - 1))
    out_w, out_b = _init_linear(keys[num_layers], hidden_dim, output_dim)
    return {"emb_w": emb_w, "emb_b": emb_b, "fan_layers": fan_layers,
            "out_w": out_w, "out_b": out_b}


# ---------------------------------------------------------------------------
# pure-JAX reference
# ---------------------------------------------------------------------------
def _reference_model(src, params, matmul_dtype=jnp.float32):
    def lin(x, w, b):
        return jnp.dot(x.astype(matmul_dtype), w.astype(matmul_dtype),
                       preferred_element_type=jnp.float32) + b

    x = lin(src, params["emb_w"], params["emb_b"])
    for (wp, bp, wg, bg, off, amp) in params["fan_layers"]:
        p = lin(x, wp, bp)
        g = jax.nn.gelu(lin(x, wg, bg), approximate=False)
        sin_part = amp * jnp.sin(p + off)
        cos_part = amp * jnp.cos(p + math.pi / 2 - off)
        x = jnp.concatenate([sin_part, cos_part, g], axis=-1)
    return lin(x, params["out_w"], params["out_b"])


if __name__ == "__main__":
    key = jax.random.PRNGKey(0)
    batch, seq = 2, 8
    input_dim, output_dim, hidden_dim, num_layers = 4, 2, 128, 3  # p_dim=32, g_dim=64

    k_x, k_p = jax.random.split(key)
    src = jax.random.normal(k_x, (batch, seq, input_dim), dtype=jnp.float32)
    params = init_model_params(k_p, input_dim, output_dim, hidden_dim, num_layers)

    out = fan_amplitude_phase_model_forward(src, params)
    out = jax.block_until_ready(out)
    assert out.shape == (batch, seq, output_dim)

    # primary check: reference with the same bf16 MXU operands (tight tolerance)
    ref_bf16 = _reference_model(src, params, matmul_dtype=jnp.bfloat16)
    assert jnp.allclose(out, ref_bf16, atol=3e-3, rtol=3e-3), "mismatch vs bf16 reference"

    # semantic sanity check vs full-f32 reference (bf16 matmul rounding allowed)
    ref_f32 = _reference_model(src, params, matmul_dtype=jnp.float32)
    assert jnp.allclose(out, ref_f32, atol=7e-2, rtol=7e-2), "mismatch vs f32 reference"

    print("KERNEL_OK")
</pallas_src>

<mosaic_0001>
module attributes {stable_mosaic.version = 11 : i64} {
  func.func @_linear_kernel(%arg0: i32, %arg1: memref<16x4xbf16, #tpu.memory_space<vmem>>, %arg2: memref<4x128xbf16, #tpu.memory_space<vmem>>, %arg3: memref<1x128xf32, #tpu.memory_space<vmem>>, %arg4: memref<16x128xf32, #tpu.memory_space<vmem>>) attributes {dimension_semantics = [#tpu.dimension_semantics<parallel>], iteration_bounds = array<i64: 1>, scalar_prefetch = 0 : i64, scratch_operands = 0 : i64, tpu.core_type = #tpu.core_type<tc>, window_params = [{transform_indices = @transform_0, window_bounds = array<i64: 16, 4>}, {pipeline_mode = #tpu.pipeline_mode<synchronous>, transform_indices = @transform_1, window_bounds = array<i64: 4, 128>}, {pipeline_mode = #tpu.pipeline_mode<synchronous>, transform_indices = @transform_2, window_bounds = array<i64: 1, 128>}, {transform_indices = @transform_3, window_bounds = array<i64: 16, 128>}]} {
    %c0 = arith.constant 0 : index
    %c0_0 = arith.constant 0 : index
    %0 = vector.load %arg1[%c0, %c0_0] : memref<16x4xbf16, #tpu.memory_space<vmem>>, vector<16x4xbf16>
    %c0_1 = arith.constant 0 : index
    %c0_2 = arith.constant 0 : index
    %1 = vector.load %arg2[%c0_1, %c0_2] : memref<4x128xbf16, #tpu.memory_space<vmem>>, vector<4x128xbf16>
    %cst = arith.constant dense<0.000000e+00> : vector<16x128xf32>
    %2 = tpu.matmul %0, %1, %cst {dimension_numbers = #tpu.dot_dimension_numbers<[1], [0], [0], [1], [0, 0, 1, 1], [], []>} : vector<16x4xbf16>, vector<4x128xbf16>, vector<16x128xf32> -> vector<16x128xf32>
    %c0_3 = arith.constant 0 : index
    %c0_4 = arith.constant 0 : index
    %3 = vector.load %arg3[%c0_3, %c0_4] : memref<1x128xf32, #tpu.memory_space<vmem>>, vector<1x128xf32>
    %4 = vector.broadcast %3 : vector<1x128xf32> to vector<16x128xf32>
    %5 = arith.addf %2, %4 : vector<16x128xf32>
    %c0_5 = arith.constant 0 : index
    %c0_6 = arith.constant 0 : index
    %6 = vector.load %arg4[%c0_5, %c0_6] : memref<16x128xf32, #tpu.memory_space<vmem>>, vector<16x128xf32>
    tpu.vector_store %arg4[%c0_5, %c0_6], %5 {strides = array<i32>} : memref<16x128xf32, #tpu.memory_space<vmem>>, vector<16x128xf32>,
    return
  }
  func.func @transform_0(%arg0: i32) -> (i32, i32) {
    %c0_i32 = arith.constant 0 : i32
    %c0_i32_0 = arith.constant 0 : i32
    return %arg0, %c0_i32 : i32, i32
  }
  func.func @transform_1(%arg0: i32) -> (i32, i32) {
    %c0_i32 = arith.constant 0 : i32
    %c0_i32_0 = arith.constant 0 : i32
    %c0_i32_1 = arith.constant 0 : i32
    return %c0_i32, %c0_i32_0 : i32, i32
  }
  func.func @transform_2(%arg0: i32) -> (i32, i32) {
    %c0_i32 = arith.constant 0 : i32
    %c0_i32_0 = arith.constant 0 : i32
    %c0_i32_1 = arith.constant 0 : i32
    return %c0_i32, %c0_i32_0 : i32, i32
  }
  func.func @transform_3(%arg0: i32) -> (i32, i32) {
    %c0_i32 = arith.constant 0 : i32
    %c0_i32_0 = arith.constant 0 : i32
    return %arg0, %c0_i32 : i32, i32
  }
}

</mosaic_0001>

<llo_original>
// kernel: tpu_custom_call.1
$region0: #{tpu_custom_call.1}
  #allocation0 [shape = 'u32[]', space=smem, size = 0x4, offset = 0x4, fixed_abs, tag = 'smem constant byte address 0x4 - core index']
  #allocation1 [shape = 'u32[144,128]{1,0:T(1,128)}', space=vmem, size = 0x12000, scoped, tag = 'internal scratch']
  %s0 = inlined_call_operand.vmem [shape: bf16[16,4], index: 0, kind: input, shape index: {}]
  %s1 = inlined_call_operand.vmem [shape: bf16[4,128], index: 1, kind: input, shape index: {}]
  %s2 = inlined_call_operand.vmem [shape: f32[1,128], index: 2, kind: input, shape index: {}]
  %s3 = inlined_call_operand.hbm [shape: f32[16,128], index: 3, kind: output, shape index: {}]
  %s4 = sld [smem:[#allocation0]]
  $region22: #{tpu_custom_call.1} parent=0
    _
  %s6 = ssub.s32 1, %s4
  %s7 = scalar_select 0, %s6, %s4
  $region1: #{tpu_custom_call.1} parent=0
    #allocation2 [shape = 'u8[8192]{0}', space=vmem, size = 0x2000, scoped, tag = 'output window, operand 0, single buffered']
    #allocation3 [shape = 's32[1]{0}', space=sflag, size = 0x4, scoped, tag = 'scoped memory for tpu_custom_call.1']
    %8 = vsyncpa [#allocation3], 0
    // Predicated region
    $region2: #{tpu_custom_call.1} parent=1 // pred_check
      _
    $region3: #{tpu_custom_call.1} parent=1 // pred_check_branch
      %10 = sbr.rel (0) target = $region5
    $region4: #{tpu_custom_call.1} parent=1 // pred_region
      _
    $region5: #{tpu_custom_call.1} parent=1 // pred_fallthru
      _
    // Predicated region
    $region6: #{tpu_custom_call.1} parent=1 // pred_check
      _
    $region7: #{tpu_custom_call.1} parent=1 // pred_check_branch
      %12 = sbr.rel (0) target = $region9
    $region8: #{tpu_custom_call.1} parent=1 // pred_region
      _
    $region9: #{tpu_custom_call.1} parent=1 // pred_fallthru
      _
    // Predicated region
    $region10: #{tpu_custom_call.1} parent=1 // pred_check
      _
    $region11: #{tpu_custom_call.1} parent=1 // pred_check_branch
      %14 = sbr.rel (0) target = $region13
    $region12: #{tpu_custom_call.1} parent=1 // pred_region
      _
    $region13: #{tpu_custom_call.1} parent=1 // pred_fallthru
      _
    %v16 = vld [vmem:[%s0] sm:$0xf]
    %v17 = vld [vmem:[%s0 + $0x4] sm:$0xf]
    %v18 = vld [vmem:[%s1] sm:$0x3]
    %v19 = vld [vmem:[%s2] sm:$0x1]
    %v21 = vlaneseq
    %v22 = vshrl.u32 %v21, 7
    %v23 = vsub.s32 0, %v22
    %v24 = vrot.slane %v19, %v23
    %v28 = vunpack.c.l.b16 %v16
    %v29 = vunpack.c.l.b16 %v17
    %v30 = vpack.c.b16 %v29, %v28
    %vm31 = vcmask 31744
    %v33 = vsel %vm31, %v30, 0
    %vm35 = vcmask 1041408
    %v37 = vsel %vm35, %v18, 0
    %39 = vmatprep.subr.bf16.mxu0 0
    %40 = vmatpush1.bf16.msra.mxu0 0
    %41 = vmatprep.subr.bf16.mxu0 0
    %42 = vmatpush1.bf16.msra.mxu0 0
    %43 = vmatprep.subr.bf16.mxu0 0
    %44 = vmatpush1.bf16.msra.mxu0 0
    %45 = vmatprep.subr.bf16.mxu0 0
    %46 = vmatpush1.bf16.msra.mxu0 0
    %47 = vmatprep.subr.bf16.mxu0 0
    %48 = vmatpush1.bf16.msra.mxu0 0
    %49 = vmatprep.subr.bf16.mxu0 0
    %50 = vmatpush1.bf16.msra.mxu0 0
    %51 = vmatprep.subr.bf16.mxu0 0
    %52 = vmatpush1.bf16.msra.mxu0 0
    %53 = vmatprep.subr.bf16.mxu0 0
    %54 = vmatpush1.bf16.msra.mxu0 %v37
    %55 = vmatprep.subr.bf16.mxu0 0
    %56 = vmatpush2.bf16.msra.mxu0 0
    %57 = vmatprep.subr.bf16.mxu0 0
    %58 = vmatpush2.bf16.msra.mxu0 0
    %59 = vmatprep.subr.bf16.mxu0 0
    %60 = vmatpush2.bf16.msra.mxu0 0
    %61 = vmatprep.subr.bf16.mxu0 0
    %62 = vmatpush2.bf16.msra.mxu0 0
    %63 = vmatprep.subr.bf16.mxu0 0
    %64 = vmatpush2.bf16.msra.mxu0 0
    %65 = vmatprep.subr.bf16.mxu0 0
    %66 = vmatpush2.bf16.msra.mxu0 0
    %67 = vmatprep.subr.bf16.mxu0 0
    %68 = vmatpush2.bf16.msra.mxu0 0
    %69 = vmatprep.subr.bf16.mxu0 0
    %70 = vmatpush2.bf16.msra.mxu0 0
    %71 = vmatprep.mubr.bf16.mxu0 0
    %72 = vmatmul.mubr.bf16.gmra.mxu0 %v33
    %v73 = vpop.f32.mrf.mxu0
    %v74 = vadd.f32 %v24, %v73
    %v75 = vpop.f32.mrf.mxu0
    %v76 = vpop.f32.mrf.mxu0
    %v77 = vadd.f32 %v24, %v76
    %v78 = vpop.f32.mrf.mxu0
    %79 = vdwg.mxu0
    %80 = vst [vmem:[#allocation2] sm:$0xff] %v74
    %81 = vst [vmem:[#allocation2 + $0x8] sm:$0xff] %v77
    // Predicated region
    $region14: #{tpu_custom_call.1} parent=1 // pred_check
      _
    $region15: #{tpu_custom_call.1} parent=1 // pred_check_branch
      %83 = sbr.rel (0) target = $region17
    $region16: #{tpu_custom_call.1} parent=1 // pred_region
      %s85 = ssub.s32 256, 256
      %86 = vsyncadd [#allocation3], %s85
      %s87 = sshll.u32 [#allocation2], 4
      %s88 = int_to_ptr.vmem [resolvable:$true] %s87
      %93 = dma.vmem_to_hbm [thread:$0]  %s88, 256, %s3, [#allocation3], 128, 128, 8
    $region17: #{tpu_custom_call.1} parent=1 // pred_fallthru
      _
    // Predicated region
    $region18: #{tpu_custom_call.1} parent=1 // pred_check
      _
    $region19: #{tpu_custom_call.1} parent=1 // pred_check_branch
      %95 = sbr.rel (0) target = $region21
    $region20: #{tpu_custom_call.1} parent=1 // pred_region
      %96 = dma.done [#allocation3], 256
    $region21: #{tpu_custom_call.1} parent=1 // pred_fallthru
      _
    %97 = vsyncpa [#allocation3], 1

</llo_original>
